<compile_context>
chip_gen: v5e
topology: v5e:2x2
jax: 0.10.0
libtpu: 0.0.40
codegen_flags: <defaults>
</compile_context>

<pallas_src>
import jax
import jax.numpy as jnp
from jax.experimental import pallas as pl
from jax.experimental.pallas import tpu as pltpu


def _dual_memory_kernel(x_ref, memt_ref, m2_ref, out_p_ref, out_s_ref):
    """L2 distances between each feature vector and each memory row.

    x_ref:     (Bp, D)   feature vectors, batch padded to a sublane multiple
    memt_ref:  (D, 2M)   [primary ; secondary] memories, pre-transposed (lane-dense)
    m2_ref:    (1, 2M)   precomputed squared row norms of the memories
    out_p_ref: (Bp, M)   primary distances
    out_s_ref: (Bp, M)   secondary distances
    """
    x = x_ref[...]
    xf = x.astype(jnp.float32)
    # ||x||^2 per row (tiny cross-lane reduction, f32).
    x2 = jnp.sum(xf * xf, axis=-1, keepdims=True)                        # (Bp, 1)
    # Single 2M-wide MXU contraction over D (operands in native dtype).
    xm = jnp.dot(x, memt_ref[...], preferred_element_type=jnp.float32)   # (Bp, 2M)
    # ||m - x||^2 = ||x||^2 + ||m||^2 - 2 x.m ; clamp for fp cancellation.
    d2 = jnp.maximum(x2 + m2_ref[...] - 2.0 * xm, 0.0)
    d = jnp.sqrt(d2)                                                      # (Bp, 2M)
    m = out_p_ref.shape[-1]
    # Both halves are 128-lane aligned -> two unmasked lane-dense stores.
    out_p_ref[...] = d[:, :m].astype(out_p_ref.dtype)
    out_s_ref[...] = d[:, m:].astype(out_s_ref.dtype)


def prepare_memories(primary_memory, secondary_memory):
    """One-time (init-time) preparation of the memory operands.

    Returns:
      mem_t: (D, 2M) concatenated, transposed memories (MXU-natural (K, N)).
      m2:    (1, 2M) squared L2 norms of each memory row.
    """
    mem = jnp.concatenate([primary_memory, secondary_memory], axis=0)  # (2M, D)
    m2 = jnp.sum(mem.astype(jnp.float32) ** 2, axis=-1)[None, :]       # (1, 2M)
    return mem.T, m2


@jax.jit
def dual_memory_forward(feature_vector, mem_t, m2):
    """Pallas forward: returns (primary_similarity, secondary_similarity).

    feature_vector: (B, D)
    mem_t:          (D, 2M)  from prepare_memories
    m2:             (1, 2M)  from prepare_memories
    """
    B, D = feature_vector.shape
    Dm, two_m = mem_t.shape
    assert D == Dm and two_m % 2 == 0
    M = two_m // 2

    # Pad batch to the 8-sublane granularity -> unmasked stores, full MXU rows.
    Bp = max(8, -(-B // 8) * 8)
    x = feature_vector
    if Bp != B:
        x = jnp.pad(x, ((0, Bp - B), (0, 0)))

    itemsize = jnp.dtype(jnp.float32).itemsize
    cost = pl.CostEstimate(
        flops=2 * Bp * D * two_m + 4 * Bp * two_m + 2 * Bp * D,
        transcendentals=Bp * two_m,
        bytes_accessed=itemsize * (Bp * D + D * two_m + two_m + Bp * two_m),
    )

    vmem = pltpu.MemorySpace.VMEM
    out_p, out_s = pl.pallas_call(
        _dual_memory_kernel,
        out_shape=(
            jax.ShapeDtypeStruct((Bp, M), jnp.float32),
            jax.ShapeDtypeStruct((Bp, M), jnp.float32),
        ),
        in_specs=[
            pl.BlockSpec(memory_space=vmem),
            pl.BlockSpec(memory_space=vmem),
            pl.BlockSpec(memory_space=vmem),
        ],
        out_specs=(
            pl.BlockSpec(memory_space=vmem),
            pl.BlockSpec(memory_space=vmem),
        ),
        cost_estimate=cost,
    )(x, mem_t, m2)

    if Bp != B:
        out_p = out_p[:B]
        out_s = out_s[:B]
    return out_p, out_s


def dual_memory_reference(feature_vector, primary_memory, secondary_memory):
    """Pure-JAX reference mirroring the PyTorch forward (broadcast-diff form)."""
    diff_p = primary_memory[None, :, :] - feature_vector[:, None, :]
    diff_s = secondary_memory[None, :, :] - feature_vector[:, None, :]
    return (
        jnp.sqrt(jnp.sum(diff_p * diff_p, axis=-1)),
        jnp.sqrt(jnp.sum(diff_s * diff_s, axis=-1)),
    )


if __name__ == "__main__":
    # Shapes consistent with the module: input_size = 32, memory_size = 128, batch = 2.
    batch = 2
    input_size = 32
    memory_size = 128

    key = jax.random.PRNGKey(0)
    k_x, k_pm, k_sm = jax.random.split(key, 3)

    # Parameters: torch.randn(memory_size, input_size) * 0.01 analogue.
    primary_memory = jax.random.normal(k_pm, (memory_size, input_size), jnp.float32) * 0.01
    secondary_memory = jax.random.normal(k_sm, (memory_size, input_size), jnp.float32) * 0.01

    # Example input feature vectors.
    feature_vector = jax.random.normal(k_x, (batch, input_size), jnp.float32)

    # One-time memory prep (parameters), hoisted out of the per-call path.
    mem_t, m2 = prepare_memories(primary_memory, secondary_memory)

    psim, ssim = dual_memory_forward(feature_vector, mem_t, m2)
    psim = jax.block_until_ready(psim)
    ssim = jax.block_until_ready(ssim)

    # Correctness check vs. pure-JAX reference (direct diff formulation).
    psim_ref, ssim_ref = dual_memory_reference(
        feature_vector, primary_memory, secondary_memory
    )
    assert psim.shape == (batch, memory_size)
    assert ssim.shape == (batch, memory_size)
    # Gram-matrix form has slightly different rounding than the diff form;
    # use a tolerance appropriate for f32 distance values of O(5).
    assert jnp.allclose(psim, psim_ref, atol=1e-4, rtol=1e-5)
    assert jnp.allclose(ssim, ssim_ref, atol=1e-4, rtol=1e-5)

    print("KERNEL_OK")
</pallas_src>

<mosaic_0001>
module attributes {stable_mosaic.version = 11 : i64} {
  func.func @_dual_memory_kernel(%arg0: memref<8x32xf32, #tpu.memory_space<vmem>>, %arg1: memref<32x256xf32, #tpu.memory_space<vmem>>, %arg2: memref<1x256xf32, #tpu.memory_space<vmem>>, %arg3: memref<8x128xf32, #tpu.memory_space<vmem>>, %arg4: memref<8x128xf32, #tpu.memory_space<vmem>>) attributes {dimension_semantics = [], scalar_prefetch = 0 : i64, scratch_operands = 0 : i64, tpu.core_type = #tpu.core_type<tc>} {
    %c0 = arith.constant 0 : index
    %c0_0 = arith.constant 0 : index
    %0 = vector.load %arg0[%c0, %c0_0] : memref<8x32xf32, #tpu.memory_space<vmem>>, vector<8x32xf32>
    %1 = arith.mulf %0, %0 : vector<8x32xf32>
    %cst = arith.constant dense<0.000000e+00> : vector<8xf32>
    %2 = vector.multi_reduction <add>, %1, %cst [1] : vector<8x32xf32> to vector<8xf32>
    %3 = vector.shape_cast %2 : vector<8xf32> to vector<8x1xf32>
    %c0_1 = arith.constant 0 : index
    %c0_2 = arith.constant 0 : index
    %4 = vector.load %arg1[%c0_1, %c0_2] : memref<32x256xf32, #tpu.memory_space<vmem>>, vector<32x256xf32>
    %cst_3 = arith.constant dense<0.000000e+00> : vector<8x256xf32>
    %5 = tpu.matmul %0, %4, %cst_3 {dimension_numbers = #tpu.dot_dimension_numbers<[1], [0], [0], [1], [0, 0, 1, 1], [], []>} : vector<8x32xf32>, vector<32x256xf32>, vector<8x256xf32> -> vector<8x256xf32>
    %c0_4 = arith.constant 0 : index
    %c0_5 = arith.constant 0 : index
    %6 = vector.load %arg2[%c0_4, %c0_5] : memref<1x256xf32, #tpu.memory_space<vmem>>, vector<1x256xf32>
    %7 = vector.broadcast %3 : vector<8x1xf32> to vector<8x256xf32>
    %8 = vector.broadcast %6 : vector<1x256xf32> to vector<8x256xf32>
    %9 = arith.addf %7, %8 : vector<8x256xf32>
    %cst_6 = arith.constant 2.000000e+00 : f32
    %10 = vector.broadcast %cst_6 : f32 to vector<8x256xf32>
    %11 = arith.mulf %10, %5 : vector<8x256xf32>
    %12 = arith.subf %9, %11 : vector<8x256xf32>
    %cst_7 = arith.constant 0.000000e+00 : f32
    %13 = vector.broadcast %cst_7 : f32 to vector<8x256xf32>
    %14 = arith.maximumf %12, %13 : vector<8x256xf32>
    %15 = math.sqrt %14 : vector<8x256xf32>
    %16 = vector.extract_strided_slice %15 {offsets = [0, 0], sizes = [8, 128], strides = [1, 1]} : vector<8x256xf32> to vector<8x128xf32>
    %c0_8 = arith.constant 0 : index
    %c0_9 = arith.constant 0 : index
    %17 = vector.load %arg3[%c0_8, %c0_9] : memref<8x128xf32, #tpu.memory_space<vmem>>, vector<8x128xf32>
    tpu.vector_store %arg3[%c0_8, %c0_9], %16 {strides = array<i32>} : memref<8x128xf32, #tpu.memory_space<vmem>>, vector<8x128xf32>,
    %18 = vector.extract_strided_slice %15 {offsets = [0, 128], sizes = [8, 128], strides = [1, 1]} : vector<8x256xf32> to vector<8x128xf32>
    %c0_10 = arith.constant 0 : index
    %c0_11 = arith.constant 0 : index
    %19 = vector.load %arg4[%c0_10, %c0_11] : memref<8x128xf32, #tpu.memory_space<vmem>>, vector<8x128xf32>
    tpu.vector_store %arg4[%c0_10, %c0_11], %18 {strides = array<i32>} : memref<8x128xf32, #tpu.memory_space<vmem>>, vector<8x128xf32>,
    return
  }
}

</mosaic_0001>

<llo_original>
// kernel: dual_memory_forward.1
$region0: #{dual_memory_forward.1}
  #allocation0 [shape = 'u32[]', space=smem, size = 0x4, offset = 0x4, fixed_abs, tag = 'smem constant byte address 0x4 - core index']
  #allocation1 [shape = 'u32[72,128]{1,0:T(1,128)}', space=vmem, size = 0x9000, scoped, tag = 'internal scratch']
  %s0 = inlined_call_operand.vmem [shape: f32[8,32], index: 0, kind: input, shape index: {}]
  %s1 = inlined_call_operand.hbm [shape: f32[32,256], index: 1, kind: input, shape index: {}]
  %s2 = inlined_call_operand.vmem [shape: f32[1,256], index: 2, kind: input, shape index: {}]
  %s3 = inlined_call_operand.vmem [shape: f32[8,128], index: 3, kind: output, shape index: {0}]
  %s4 = inlined_call_operand.vmem [shape: f32[8,128], index: 4, kind: output, shape index: {1}]
  %5 = xla_tuple %s3, %s4
  %s6 = sld [smem:[#allocation0]]
  $region34: #{dual_memory_forward.1} parent=0
    _
  %s8 = ssub.s32 1, %s6
  %s9 = scalar_select 0, %s8, %s6
  $region1: #{dual_memory_forward.1} parent=0
    #allocation2 [shape = 'u8[32768]{0}', space=vmem, size = 0x8000, scoped, tag = 'input window, operand 1, single buffered']
    #allocation3 [shape = 's32[1]{0}', space=sflag, size = 0x4, scoped, tag = 'scoped memory for dual_memory_forward.1']
    %10 = vsyncpa [#allocation3], 0
    // Predicated region
    $region2: #{dual_memory_forward.1} parent=1 // pred_check
      _
    $region3: #{dual_memory_forward.1} parent=1 // pred_check_branch
      %12 = sbr.rel (0) target = $region5
    $region4: #{dual_memory_forward.1} parent=1 // pred_region
      _
    $region5: #{dual_memory_forward.1} parent=1 // pred_fallthru
      _
    // Predicated region
    $region6: #{dual_memory_forward.1} parent=1 // pred_check
      _
    $region7: #{dual_memory_forward.1} parent=1 // pred_check_branch
      %14 = sbr.rel (0) target = $region9
    $region8: #{dual_memory_forward.1} parent=1 // pred_region
      %16 = vsyncadd [#allocation3], 0
      %s17 = sshll.u32 %s1, 4
      %s18 = int_to_ptr.hbm [resolvable:$true] %s17
      %s19 = sshll.u32 [#allocation2], 4
      %s20 = int_to_ptr.vmem [resolvable:$true] %s19
      %25 = dma.hbm_to_vmem [thread:$0]  %s18, 1024, %s20, [#allocation3], 256, 256, 16
    $region9: #{dual_memory_forward.1} parent=1 // pred_fallthru
      _
    // Predicated region
    $region10: #{dual_memory_forward.1} parent=1 // pred_check
      _
    $region11: #{dual_memory_forward.1} parent=1 // pred_check_branch
      %27 = sbr.rel (0) target = $region13
    $region12: #{dual_memory_forward.1} parent=1 // pred_region
      _
    $region13: #{dual_memory_forward.1} parent=1 // pred_fallthru
      _
    // Predicated region
    $region14: #{dual_memory_forward.1} parent=1 // pred_check
      _
    $region15: #{dual_memory_forward.1} parent=1 // pred_check_branch
      %29 = sbr.rel (0) target = $region17
    $region16: #{dual_memory_forward.1} parent=1 // pred_region
      %31 = dma.done [#allocation3], 1024
    $region17: #{dual_memory_forward.1} parent=1 // pred_fallthru
      _
    %v32 = vld [vmem:[%s0] sm:$0xff]
    %v33 = vmul.f32 %v32, %v32
    %vm34 = vcmask 261120
    %v35 = vsel %vm34, %v33, 0.0
    %36 = vadd.xlane.f32.xlu0 %v35
    %v37 = vpop.xlane.xlu0 %36
    %v38 = vld [vmem:[#allocation2] sm:$0xff]
    %v39 = vld [vmem:[#allocation2 + $0x8] sm:$0xff]
    %v40 = vld [vmem:[#allocation2 + $0x10] sm:$0xff]
    %v41 = vld [vmem:[#allocation2 + $0x18] sm:$0xff]
    %v42 = vld [vmem:[#allocation2 + $0x20] sm:$0xff]
    %v43 = vld [vmem:[#allocation2 + $0x28] sm:$0xff]
    %v44 = vld [vmem:[#allocation2 + $0x30] sm:$0xff]
    %v45 = vld [vmem:[#allocation2 + $0x38] sm:$0xff]
    %v47 = vsel %vm34, %v32, 0
    %49 = vmatpush.msra.mxu0 0.0
    %50 = vmatpush.msra.mxu0 0.0
    %51 = vmatpush.msra.mxu0 0.0
    %52 = vmatpush.msra.mxu0 0.0
    %53 = vmatpush.msra.mxu0 0.0
    %54 = vmatpush.msra.mxu0 0.0
    %55 = vmatpush.msra.mxu0 0.0
    %56 = vmatpush.msra.mxu0 0.0
    %57 = vmatpush.msra.mxu0 0.0
    %58 = vmatpush.msra.mxu0 0.0
    %59 = vmatpush.msra.mxu0 0.0
    %60 = vmatpush.msra.mxu0 0.0
    %61 = vmatpush.msra.mxu0 %v44
    %62 = vmatpush.msra.mxu0 %v42
    %63 = vmatpush.msra.mxu0 %v40
    %64 = vmatpush.msra.mxu0 %v38
    %65 = vmatmul.f32.gmra.mxu0 %v47
    %v66 = vpop.f32.mrf.mxu0
    %v67 = vadd.f32 0.0, %v66
    %68 = vdwg.mxu0
    %69 = vmatpush.msra.mxu0 0.0
    %70 = vmatpush.msra.mxu0 0.0
    %71 = vmatpush.msra.mxu0 0.0
    %72 = vmatpush.msra.mxu0 0.0
    %73 = vmatpush.msra.mxu0 0.0
    %74 = vmatpush.msra.mxu0 0.0
    %75 = vmatpush.msra.mxu0 0.0
    %76 = vmatpush.msra.mxu0 0.0
    %77 = vmatpush.msra.mxu0 0.0
    %78 = vmatpush.msra.mxu0 0.0
    %79 = vmatpush.msra.mxu0 0.0
    %80 = vmatpush.msra.mxu0 0.0
    %81 = vmatpush.msra.mxu0 %v45
    %82 = vmatpush.msra.mxu0 %v43
    %83 = vmatpush.msra.mxu0 %v41
    %84 = vmatpush.msra.mxu0 %v39
    %85 = vmatmul.f32.gmra.mxu0 %v47
    %v86 = vpop.f32.mrf.mxu0
    %v87 = vadd.f32 0.0, %v86
    %88 = vdwg.mxu0
    %v89 = vld [vmem:[%s2] sm:$0x3]
    %v91 = vperm.slane %v89, 0
    %v92 = vperm.slane %v89, 1
    %v95 = vadd.f32 %v37, %v91
    %v96 = vadd.f32 %v37, %v92
    %v97 = vmul.f32 %v67, 2.0
    %v98 = vmul.f32 %v87, 2.0
    %v99 = vsub.f32 %v95, %v97
    %v100 = vsub.f32 %v96, %v98
    %v101 = vmax.f32 %v99, 0.0
    %v102 = vmax.f32 %v100, 0.0
    %v103 = vrsqrt.pop %v101
    %v104 = vmul.f32 %v103, %v101
    %v105 = vmul.f32 %v104, %v103
    %v106 = vmul.f32 0.5, %v105
    %v107 = vsub.f32 1.5, %v106
    %v108 = vmul.f32 %v103, %v107
    %v109 = vmul.f32 %v101, %v108
    %vm110 = vcmp.eq.f32.partialorder %v101, inf
    %v111 = vsel %vm110, %v101, %v109
    %vm112 = vcmp.eq.f32.partialorder %v101, 0.0
    %v113 = vand.u32 %v101, 2147483648
    %v114 = vsel %vm112, %v113, %v111
    %v115 = vrsqrt.pop %v102
    %v116 = vmul.f32 %v115, %v102
    %v117 = vmul.f32 %v116, %v115
    %v118 = vmul.f32 0.5, %v117
    %v119 = vsub.f32 1.5, %v118
    %v120 = vmul.f32 %v115, %v119
    %v121 = vmul.f32 %v102, %v120
    %vm122 = vcmp.eq.f32.partialorder %v102, inf
    %v123 = vsel %vm122, %v102, %v121
    %vm124 = vcmp.eq.f32.partialorder %v102, 0.0
    %v125 = vand.u32 %v102, 2147483648
    %v126 = vsel %vm124, %v125, %v123
    %127 = vst [vmem:[%s3] sm:$0xff] %v114
    %128 = vst [vmem:[%s4] sm:$0xff] %v126
    // Predicated region
    $region18: #{dual_memory_forward.1} parent=1 // pred_check
      _
    $region19: #{dual_memory_forward.1} parent=1 // pred_check_branch
      %130 = sbr.rel (0) target = $region21
    $region20: #{dual_memory_forward.1} parent=1 // pred_region
      _
    $region21: #{dual_memory_forward.1} parent=1 // pred_fallthru
      _
    // Predicated region
    $region22: #{dual_memory_forward.1} parent=1 // pred_check
      _
    $region23: #{dual_memory_forward.1} parent=1 // pred_check_branch
      %132 = sbr.rel (0) target = $region25
    $region24: #{dual_memory_forward.1} parent=1 // pred_region
      _
    $region25: #{dual_memory_forward.1} parent=1 // pred_fallthru
      _
    // Predicated region
    $region26: #{dual_memory_forward.1} parent=1 // pred_check
      _
    $region27: #{dual_memory_forward.1} parent=1 // pred_check_branch
      %134 = sbr.rel (0) target = $region29
    $region28: #{dual_memory_forward.1} parent=1 // pred_region
      _
    $region29: #{dual_memory_forward.1} parent=1 // pred_fallthru
      _
    // Predicated region
    $region30: #{dual_memory_forward.1} parent=1 // pred_check
      _
    $region31: #{dual_memory_forward.1} parent=1 // pred_check_branch
      %136 = sbr.rel (0) target = $region33
    $region32: #{dual_memory_forward.1} parent=1 // pred_region
      _
    $region33: #{dual_memory_forward.1} parent=1 // pred_fallthru
      _
    %137 = vsyncpa [#allocation3], 1

</llo_original>
